<compile_context>
chip_gen: v5e
topology: v5e:2x2
jax: 0.10.0
libtpu: 0.0.40
codegen_flags: <defaults>
</compile_context>

<pallas_src>
import math
import numpy as np

import jax
import jax.numpy as jnp
from jax import lax
from jax.experimental import pallas as pl
from jax.experimental.pallas import tpu as pltpu

_LANE = 128
_SUBLANE = 8


def _round_up(x, m):
    return ((x + m - 1) // m) * m


# --------------------------------------------------------------------------------------
# Pallas kernel
# --------------------------------------------------------------------------------------
def _mixconv_kernel(p_ref, w_ref, sh_ref, o_ref):
    # p_ref:  (1, T, K*K*C1)  bf16  im2col patches
    # w_ref:  (K*K*C1, C2p)   bf16  merged branch weights (BN scale folded, grouped zeros)
    # sh_ref: (1, C2p)        f32   BN shift
    # o_ref:  (1, T, C2p)     bf16  fused lane-dense output slab (final channel order)
    y = jnp.dot(p_ref[0], w_ref[...], preferred_element_type=jnp.float32) + sh_ref[...]
    # SiLU via tanh: y * sigmoid(y) == 0.5 * y * (1 + tanh(0.5 * y))  -- single EUP op/elem.
    o_ref[0] = (0.5 * y * (1.0 + jnp.tanh(0.5 * y))).astype(o_ref.dtype)


# --------------------------------------------------------------------------------------
# Tile planning (VMEM / megacore aware)
# --------------------------------------------------------------------------------------
def _vreg_pad_bytes(rows, cols, itemsize):
    """VMEM footprint of a (rows, cols) block, accounting for (8,128) sublane/lane padding."""
    return _round_up(max(rows, 1), _SUBLANE) * _round_up(max(cols, 1), _LANE) * itemsize


def _plan_tiles(n, hw, kkc1, c2p):
    try:
        vmem_cap = int(pltpu.get_tpu_info().vmem_capacity_bytes)
    except Exception:
        vmem_cap = 64 * 1024 * 1024        # assume the smallest (v7x) if the query fails

    budget = vmem_cap * 5 // 8             # ~40 MiB on v7x, ~80 MiB on v5e/v6e
    cap = vmem_cap * 3 // 4                # vmem_limit_bytes ceiling, under physical VMEM

    max_tile = 1024 if vmem_cap >= (96 << 20) else 512
    tile = min(max_tile, _round_up(hw, _SUBLANE))
    tile = max(_SUBLANE, (tile // _SUBLANE) * _SUBLANE)

    def est(t):
        inp = 2 * _vreg_pad_bytes(t, kkc1, 2)       # bf16 patches, double-buffered
        wgt = _vreg_pad_bytes(kkc1, c2p, 2)         # bf16 merged weight, single-buffered
        sft = _vreg_pad_bytes(1, c2p, 4)            # f32 shift
        out = 2 * _vreg_pad_bytes(t, c2p, 2)        # bf16 output, double-buffered
        return inp + wgt + sft + out + (2 << 20)    # + compiler-internal scratch slack

    while tile > _SUBLANE and est(tile) > budget:
        tile = max(_SUBLANE, (tile // 2 // _SUBLANE) * _SUBLANE)

    # v7x megacore: make sure both TensorCores get at least one grid block.
    def n_blocks(t):
        return n * (_round_up(hw, t) // t)

    while n_blocks(tile) < 2 and tile > _SUBLANE:
        tile = max(_SUBLANE, (tile // 2 // _SUBLANE) * _SUBLANE)

    hw_pad = _round_up(hw, tile)
    vmem_limit = int(min(cap, max(32 << 20, est(tile) * 2)))
    return tile, hw_pad, vmem_limit


# --------------------------------------------------------------------------------------
# Wrapper
# --------------------------------------------------------------------------------------
def mixconv2d_forward(x_nchw, packed, *, nchw_out=True):
    """x_nchw: (N, C1, H, W).  packed: output of pack_params().  Returns (N, C2, H, W)
    (or NHWC if nchw_out=False for channels-last consumers)."""
    N, C1, H, W = x_nchw.shape
    K = packed["kmax"]
    pad = K // 2
    KKC1 = K * K * C1
    C2 = packed["c2"]
    C2p = packed["w_merged"].shape[1]
    HW = H * W

    # im2col in the wrapper (glue), built directly in bf16 (the matmul input dtype).
    x = jnp.transpose(x_nchw.astype(jnp.bfloat16), (0, 2, 3, 1))            # NHWC bf16
    xp = jnp.pad(x, ((0, 0), (pad, pad), (pad, pad), (0, 0)))
    cols = [xp[:, kh:kh + H, kw:kw + W, :] for kh in range(K) for kw in range(K)]
    patches = jnp.concatenate(cols, axis=-1).reshape(N, HW, KKC1)

    tile_hw, hw_pad, vmem_limit = _plan_tiles(N, HW, KKC1, C2p)
    if hw_pad != HW:
        patches = jnp.pad(patches, ((0, 0), (0, hw_pad - HW), (0, 0)))

    def run(buffered_weights):
        wkw = dict(pipeline_mode=pl.Buffered(1)) if buffered_weights else {}
        return pl.pallas_call(
            _mixconv_kernel,
            out_shape=jax.ShapeDtypeStruct((N, hw_pad, C2p), jnp.bfloat16),
            grid_spec=pltpu.PrefetchScalarGridSpec(
                num_scalar_prefetch=0,
                grid=(N, hw_pad // tile_hw),
                in_specs=[
                    pl.BlockSpec((1, tile_hw, KKC1), lambda n, t: (n, t, 0)),
                    pl.BlockSpec((KKC1, C2p), lambda n, t: (0, 0), **wkw),
                    pl.BlockSpec((1, C2p), lambda n, t: (0, 0), **wkw),
                ],
                out_specs=pl.BlockSpec((1, tile_hw, C2p), lambda n, t: (n, t, 0)),
            ),
            compiler_params=pltpu.CompilerParams(
                dimension_semantics=("parallel", "parallel"),
                vmem_limit_bytes=vmem_limit,
            ),
        )(patches, packed["w_merged"], packed["shift"])

    try:
        o = run(True)
    except Exception:
        # JAX build without BlockSpec(pipeline_mode=...): fall back to default buffering.
        o = run(False)

    # Columns are already in the module's concat order; just drop padding.
    y = o[:, :HW, :C2].reshape(N, H, W, C2)
    if not nchw_out:
        return y
    return jnp.transpose(y, (0, 3, 1, 2))                                    # back to NCHW


# --------------------------------------------------------------------------------------
# Parameter building / packing
# --------------------------------------------------------------------------------------
def build_params(c1, c2, k=(1, 3), seed=0):
    """Deterministic parameters matching MixConv2d.__init__ shapes (equal_ch=True, s=1)."""
    n = len(k)
    i = np.floor(np.linspace(0.0, n - 1e-6, c2))
    c_ = [int((i == g).sum()) for g in range(n)]

    key = jax.random.PRNGKey(seed)
    keys = jax.random.split(key, n + 4)

    branch_ws = []
    for bi, (kk, cc) in enumerate(zip(k, c_)):
        groups = math.gcd(c1, cc)
        # PyTorch Conv2d weight shape: (out, in/groups, kH, kW), bias=False
        w = 0.1 * jax.random.normal(keys[bi], (cc, c1 // groups, kk, kk), jnp.float32)
        branch_ws.append(np.asarray(w))

    # BatchNorm2d(c2) parameters (eval mode), deterministic.
    gamma = 1.0 + 0.1 * jax.random.normal(keys[-4], (c2,), jnp.float32)
    beta = 0.1 * jax.random.normal(keys[-3], (c2,), jnp.float32)
    rmean = 0.1 * jax.random.normal(keys[-2], (c2,), jnp.float32)
    rvar = jnp.abs(jax.random.normal(keys[-1], (c2,), jnp.float32)) + 0.5
    eps = 1e-5
    scale = gamma / jnp.sqrt(rvar + eps)
    shift = beta - rmean * scale

    return dict(
        branch_ws=branch_ws, c_=c_, k=k, c1=c1,
        scale=scale, shift=shift,
        gamma=gamma, beta=beta, rmean=rmean, rvar=rvar, eps=eps,
    )


def pack_params(c1, k, branch_ws, c_, scale, shift):
    """Pack all branch weights into a single (K*K*C1, C2p) matrix (BN scale folded in,
    grouped connectivity as structural zeros, 1x1 taps in the center-pixel rows), with
    columns in the module's channel-concat order and padded to a lane-dense width."""
    kmax = max(k)
    kkc1 = kmax * kmax * c1
    c2 = int(sum(c_))
    c2p = _round_up(c2, _LANE)
    scale = np.asarray(scale, np.float32)
    shift = np.asarray(shift, np.float32)

    w_m = np.zeros((kkc1, c2p), np.float32)
    sh = np.zeros((1, c2p), np.float32)

    off_g = 0
    for kk, cc, w in zip(k, c_, branch_ws):
        groups = math.gcd(c1, cc)
        in_per_g = c1 // groups
        out_per_g = cc // groups
        koff = (kmax - kk) // 2
        for oc in range(cc):
            g = oc // out_per_g
            col = off_g + oc
            s = scale[col]
            for icl in range(in_per_g):
                ic = g * in_per_g + icl
                for kh in range(kk):
                    for kw in range(kk):
                        row = ((kh + koff) * kmax + (kw + koff)) * c1 + ic
                        w_m[row, col] = w[oc, icl, kh, kw] * s
            sh[0, col] = shift[col]
        off_g += cc

    return dict(
        kmax=kmax,
        c2=c2,
        w_merged=jnp.asarray(w_m, jnp.bfloat16),
        shift=jnp.asarray(sh, jnp.float32),
    )


# --------------------------------------------------------------------------------------
# Pure-JAX reference
# --------------------------------------------------------------------------------------
def reference(x_nchw, p):
    """Grouped convs per branch -> concat -> BN(eval) -> SiLU."""
    outs = []
    for kk, cc, w in zip(p["k"], p["c_"], p["branch_ws"]):
        groups = math.gcd(p["c1"], cc)
        rhs = jnp.asarray(np.transpose(w, (2, 3, 1, 0)))  # (kH,kW,in/g,out) HWIO
        y = lax.conv_general_dilated(
            x_nchw, rhs, window_strides=(1, 1),
            padding=[(kk // 2, kk // 2)] * 2,
            dimension_numbers=("NCHW", "HWIO", "NCHW"),
            feature_group_count=groups)
        outs.append(y)
    y = jnp.concatenate(outs, axis=1)
    yn = (y - p["rmean"][None, :, None, None]) / jnp.sqrt(p["rvar"][None, :, None, None] + p["eps"])
    yn = yn * p["gamma"][None, :, None, None] + p["beta"][None, :, None, None]
    return yn * jax.nn.sigmoid(yn)


if __name__ == "__main__":
    c1, c2 = 4, 4               # c_ = [2, 2]; groups = gcd(4,2) = 2 per branch
    N, H, W = 2, 16, 16

    params = build_params(c1, c2, k=(1, 3), seed=0)
    packed = pack_params(c1, params["k"], params["branch_ws"], params["c_"],
                         params["scale"], params["shift"])

    x = jax.random.normal(jax.random.PRNGKey(0), (N, c1, H, W), jnp.float32)

    out = mixconv2d_forward(x, packed)
    out = jax.block_until_ready(out)

    ref = reference(x, params)
    # bf16 matmul inputs + bf16 output -> loosened tolerance (f32 accumulation + f32 epilogue).
    out_f32 = np.asarray(jnp.asarray(out, jnp.float32))
    np.testing.assert_allclose(out_f32, np.asarray(ref), rtol=3e-2, atol=3e-2)

    print("KERNEL_OK")
</pallas_src>

<mosaic_0001>
module attributes {stable_mosaic.version = 11 : i64} {
  func.func @_mixconv_kernel(%arg0: i32, %arg1: i32, %arg2: memref<1x256x36xbf16, #tpu.memory_space<vmem>>, %arg3: memref<36x128xbf16, #tpu.memory_space<vmem>>, %arg4: memref<1x128xf32, #tpu.memory_space<vmem>>, %arg5: memref<1x256x128xbf16, #tpu.memory_space<vmem>>) attributes {dimension_semantics = [#tpu.dimension_semantics<parallel>, #tpu.dimension_semantics<parallel>], iteration_bounds = array<i64: 2, 1>, scalar_prefetch = 0 : i64, scratch_operands = 0 : i64, tpu.core_type = #tpu.core_type<tc>, window_params = [{transform_indices = @transform_0, window_bounds = array<i64: 1, 256, 36>}, {pipeline_mode = #tpu.pipeline_mode<synchronous>, transform_indices = @transform_1, window_bounds = array<i64: 36, 128>}, {pipeline_mode = #tpu.pipeline_mode<synchronous>, transform_indices = @transform_2, window_bounds = array<i64: 1, 128>}, {transform_indices = @transform_3, window_bounds = array<i64: 1, 256, 128>}]} {
    %c0 = arith.constant 0 : index
    %c0_0 = arith.constant 0 : index
    %c0_1 = arith.constant 0 : index
    %0 = vector.load %arg2[%c0, %c0_0, %c0_1] : memref<1x256x36xbf16, #tpu.memory_space<vmem>>, vector<1x256x36xbf16>
    %1 = vector.shape_cast %0 : vector<1x256x36xbf16> to vector<256x36xbf16>
    %c0_2 = arith.constant 0 : index
    %c0_3 = arith.constant 0 : index
    %2 = vector.load %arg3[%c0_2, %c0_3] : memref<36x128xbf16, #tpu.memory_space<vmem>>, vector<36x128xbf16>
    %cst = arith.constant dense<0.000000e+00> : vector<256x128xf32>
    %3 = tpu.matmul %1, %2, %cst {dimension_numbers = #tpu.dot_dimension_numbers<[1], [0], [0], [1], [0, 0, 1, 1], [], []>} : vector<256x36xbf16>, vector<36x128xbf16>, vector<256x128xf32> -> vector<256x128xf32>
    %c0_4 = arith.constant 0 : index
    %c0_5 = arith.constant 0 : index
    %4 = vector.load %arg4[%c0_4, %c0_5] : memref<1x128xf32, #tpu.memory_space<vmem>>, vector<1x128xf32>
    %5 = vector.broadcast %4 : vector<1x128xf32> to vector<256x128xf32>
    %6 = arith.addf %3, %5 : vector<256x128xf32>
    %cst_6 = arith.constant 5.000000e-01 : f32
    %7 = vector.broadcast %cst_6 : f32 to vector<256x128xf32>
    %8 = arith.mulf %7, %6 : vector<256x128xf32>
    %cst_7 = arith.constant 5.000000e-01 : f32
    %9 = vector.broadcast %cst_7 : f32 to vector<256x128xf32>
    %10 = arith.mulf %9, %6 : vector<256x128xf32>
    %11 = math.tanh %10 : vector<256x128xf32>
    %cst_8 = arith.constant 1.000000e+00 : f32
    %12 = vector.broadcast %cst_8 : f32 to vector<256x128xf32>
    %13 = arith.addf %12, %11 : vector<256x128xf32>
    %14 = arith.mulf %8, %13 : vector<256x128xf32>
    %15 = arith.truncf %14 : vector<256x128xf32> to vector<256x128xbf16>
    %c0_9 = arith.constant 0 : index
    %c0_10 = arith.constant 0 : index
    %c0_11 = arith.constant 0 : index
    %16 = vector.load %arg5[%c0_9, %c0_10, %c0_11] : memref<1x256x128xbf16, #tpu.memory_space<vmem>>, vector<1x256x128xbf16>
    %17 = vector.shape_cast %16 : vector<1x256x128xbf16> to vector<256x128xbf16>
    %18 = vector.shape_cast %15 : vector<256x128xbf16> to vector<1x256x128xbf16>
    tpu.vector_store %arg5[%c0_9, %c0_10, %c0_11], %18 {strides = array<i32>} : memref<1x256x128xbf16, #tpu.memory_space<vmem>>, vector<1x256x128xbf16>,
    return
  }
  func.func @transform_0(%arg0: i32, %arg1: i32) -> (i32, i32, i32) {
    %c0_i32 = arith.constant 0 : i32
    %c0_i32_0 = arith.constant 0 : i32
    return %arg0, %arg1, %c0_i32 : i32, i32, i32
  }
  func.func @transform_1(%arg0: i32, %arg1: i32) -> (i32, i32) {
    %c0_i32 = arith.constant 0 : i32
    %c0_i32_0 = arith.constant 0 : i32
    %c0_i32_1 = arith.constant 0 : i32
    return %c0_i32, %c0_i32_0 : i32, i32
  }
  func.func @transform_2(%arg0: i32, %arg1: i32) -> (i32, i32) {
    %c0_i32 = arith.constant 0 : i32
    %c0_i32_0 = arith.constant 0 : i32
    %c0_i32_1 = arith.constant 0 : i32
    return %c0_i32, %c0_i32_0 : i32, i32
  }
  func.func @transform_3(%arg0: i32, %arg1: i32) -> (i32, i32, i32) {
    %c0_i32 = arith.constant 0 : i32
    %c0_i32_0 = arith.constant 0 : i32
    return %arg0, %arg1, %c0_i32 : i32, i32, i32
  }
}

module attributes {stable_mosaic.version = 11 : i64} {
  func.func @_mixconv_kernel(%arg0: i32, %arg1: i32, %arg2: memref<1x256x36xbf16, #tpu.memory_space<vmem>>, %arg3: memref<36x128xbf16, #tpu.memory_space<vmem>>, %arg4: memref<1x128xf32, #tpu.memory_space<vmem>>, %arg5: memref<1x256x128xbf16, #tpu.memory_space<vmem>>) attributes {dimension_semantics = [#tpu.dimension_semantics<parallel>, #tpu.dimension_semantics<parallel>], iteration_bounds = array<i64: 2, 1>, scalar_prefetch = 0 : i64, scratch_operands = 0 : i64, tpu.core_type = #tpu.core_type<tc>, window_params = [{transform_indices = @transform_0, window_bounds = array<i64: 1, 256, 36>}, {pipeline_mode = #tpu.pipeline_mode<synchronous>, transform_indices = @transform_1, window_bounds = array<i64: 36, 128>}, {pipeline_mode = #tpu.pipeline_mode<synchronous>, transform_indices = @transform_2, window_bounds = array<i64: 1, 128>}, {transform_indices = @transform_3, window_bounds = array<i64: 1, 256, 128>}]} {
    %c0 = arith.constant 0 : index
    %c0_0 = arith.constant 0 : index
    %c0_1 = arith.constant 0 : index
    %0 = vector.load %arg2[%c0, %c0_0, %c0_1] : memref<1x256x36xbf16, #tpu.memory_space<vmem>>, vector<1x256x36xbf16>
    %1 = vector.shape_cast %0 : vector<1x256x36xbf16> to vector<256x36xbf16>
    %c0_2 = arith.constant 0 : index
    %c0_3 = arith.constant 0 : index
    %2 = vector.load %arg3[%c0_2, %c0_3] : memref<36x128xbf16, #tpu.memory_space<vmem>>, vector<36x128xbf16>
    %cst = arith.constant dense<0.000000e+00> : vector<256x128xf32>
    %3 = tpu.matmul %1, %2, %cst {dimension_numbers = #tpu.dot_dimension_numbers<[1], [0], [0], [1], [0, 0, 1, 1], [], []>} : vector<256x36xbf16>, vector<36x128xbf16>, vector<256x128xf32> -> vector<256x128xf32>
    %c0_4 = arith.constant 0 : index
    %c0_5 = arith.constant 0 : index
    %4 = vector.load %arg4[%c0_4, %c0_5] : memref<1x128xf32, #tpu.memory_space<vmem>>, vector<1x128xf32>
    %5 = vector.broadcast %4 : vector<1x128xf32> to vector<256x128xf32>
    %6 = arith.addf %3, %5 : vector<256x128xf32>
    %cst_6 = arith.constant 5.000000e-01 : f32
    %7 = vector.broadcast %cst_6 : f32 to vector<256x128xf32>
    %8 = arith.mulf %7, %6 : vector<256x128xf32>
    %cst_7 = arith.constant 5.000000e-01 : f32
    %9 = vector.broadcast %cst_7 : f32 to vector<256x128xf32>
    %10 = arith.mulf %9, %6 : vector<256x128xf32>
    %11 = math.tanh %10 : vector<256x128xf32>
    %cst_8 = arith.constant 1.000000e+00 : f32
    %12 = vector.broadcast %cst_8 : f32 to vector<256x128xf32>
    %13 = arith.addf %12, %11 : vector<256x128xf32>
    %14 = arith.mulf %8, %13 : vector<256x128xf32>
    %15 = arith.truncf %14 : vector<256x128xf32> to vector<256x128xbf16>
    %c0_9 = arith.constant 0 : index
    %c0_10 = arith.constant 0 : index
    %c0_11 = arith.constant 0 : index
    %16 = vector.load %arg5[%c0_9, %c0_10, %c0_11] : memref<1x256x128xbf16, #tpu.memory_space<vmem>>, vector<1x256x128xbf16>
    %17 = vector.shape_cast %16 : vector<1x256x128xbf16> to vector<256x128xbf16>
    %18 = vector.shape_cast %15 : vector<256x128xbf16> to vector<1x256x128xbf16>
    tpu.vector_store %arg5[%c0_9, %c0_10, %c0_11], %18 {strides = array<i32>} : memref<1x256x128xbf16, #tpu.memory_space<vmem>>, vector<1x256x128xbf16>,
    return
  }
  func.func @transform_0(%arg0: i32, %arg1: i32) -> (i32, i32, i32) {
    %c0_i32 = arith.constant 0 : i32
    %c0_i32_0 = arith.constant 0 : i32
    return %arg0, %arg1, %c0_i32 : i32, i32, i32
  }
  func.func @transform_1(%arg0: i32, %arg1: i32) -> (i32, i32) {
    %c0_i32 = arith.constant 0 : i32
    %c0_i32_0 = arith.constant 0 : i32
    %c0_i32_1 = arith.constant 0 : i32
    return %c0_i32, %c0_i32_0 : i32, i32
  }
  func.func @transform_2(%arg0: i32, %arg1: i32) -> (i32, i32) {
    %c0_i32 = arith.constant 0 : i32
    %c0_i32_0 = arith.constant 0 : i32
    %c0_i32_1 = arith.constant 0 : i32
    return %c0_i32, %c0_i32_0 : i32, i32
  }
  func.func @transform_3(%arg0: i32, %arg1: i32) -> (i32, i32, i32) {
    %c0_i32 = arith.constant 0 : i32
    %c0_i32_0 = arith.constant 0 : i32
    return %arg0, %arg1, %c0_i32 : i32, i32, i32
  }
}

</mosaic_0001>

<llo_original>
// kernel: tpu_custom_call.1
$region0: #{tpu_custom_call.1}
  #allocation0 [shape = 'u32[]', space=smem, size = 0x4, offset = 0x4, fixed_abs, tag = 'smem constant byte address 0x4 - core index']
  #allocation1 [shape = 'u32[72,128]{1,0:T(1,128)}', space=vmem, size = 0x9000, scoped, tag = 'internal scratch']
  %s0 = inlined_call_operand.vmem [shape: bf16[2,256,36], index: 0, kind: input, shape index: {}]
  %s1 = inlined_call_operand.vmem [shape: bf16[36,128], index: 1, kind: input, shape index: {}]
  %s2 = inlined_call_operand.vmem [shape: f32[1,128], index: 2, kind: input, shape index: {}]
  %s3 = inlined_call_operand.hbm [shape: bf16[2,256,128], index: 3, kind: output, shape index: {}]
  %s4 = sld [smem:[#allocation0]]
  $region45: #{tpu_custom_call.1} parent=0
    _
  %s6 = ssub.s32 1, %s4
  %s7 = scalar_select 0, %s6, %s4
  $region1: #{tpu_custom_call.1} parent=0
    #allocation2 [shape = 'u8[131072]{0}', space=vmem, size = 0x20000, scoped, tag = 'output window, operand 0']
    #allocation3 [shape = 's32[2]{0}', space=sflag, size = 0x8, scoped, tag = 'scoped memory for tpu_custom_call.1']
    %8 = vsyncpa [#allocation3], 0
    %s9 = scalar_lea.sflag [#allocation3], 1
    %10 = vsyncpa %s9, 0
    loop: start=0, step=1, limit=4
    $region2: #{tpu_custom_call.1} parent=1 // loop_pre_header
      _
    $region3: #{tpu_custom_call.1} parent=1 // loop_header
      %s12 = sphi 0, %s16
      %p13 = scmp.ge.s32.totalorder %s12, 4
      %s19 = sphi 0, %s31
      %s20 = sphi 0, %s27
      %s21 = sphi 0, %s19
      %s22 = sphi 0, %s20
      %s23 = sphi 0, %s21
      %s24 = sphi 0, %s22
      %s36 = sphi 0, %s38
      %s39 = sphi 0, %s36
      %s40 = sphi 0, %s39
      %s56 = sphi 0, %s40
      %s60 = sphi 0, %s60
      %s62 = sphi 0, %s60
      %s63 = sphi 0, %s62
      %s77 = sphi 0, %s63
      %s81 = sphi 0, %s81
      %s83 = sphi 0, %s81
      %s84 = sphi 0, %s83
      %s98 = sphi 0, %s84
      %s106 = sphi 0, %s108
      %s109 = sphi 0, %s106
      %s110 = sphi 0, %s109
      %s126 = sphi 0, %s110
    $region4: #{tpu_custom_call.1} parent=1 // loop_header_branch
      %15 = sbr.rel (%p13) target = $region8
    $region5: #{tpu_custom_call.1} parent=1 // loop_body
      %s17 = ssub.s32 %s12, 1
      %s18 = ssub.s32 %s12, 2
      %s25 = sadd.s32 1, %s20
      %p26 = scmp.ge.s32.totalorder %s25, 1
      %s27 = scalar_select %p26, 0, %s25
      %s28 = sadd.s32 1, %s19
      %s29 = scalar_select %p26, %s28, %s19
      %p30 = scmp.ge.s32.totalorder %s29, 2
      %s31 = scalar_select %p30, 0, %s29
      %s32 = ssub.s32 %s19, %s31
      %s33 = ssub.s32 %s20, %s27
      %s34 = sor.u32 %s32, %s33
      %p35 = scmp.eq.s32.totalorder %s34, 0
      %s37 = sadd.s32 %s36, 1
      %s38 = scalar_select %p35, %s36, %s37
      %p41 = pneg %p35
      %p42 = scmp.eq.s32.totalorder %s12, 1
      %p43 = por %p41, %p42
      %p44 = scmp.ne.s32.totalorder %s36, %s39
      %p45 = scmp.eq.s32.totalorder %s12, 0
      %p46 = por %p44, %p45
      %p47 = scmp.ne.s32.totalorder %s36, %s39
      %p48 = scmp.eq.s32.totalorder %s17, 1
      %p49 = por %p47, %p48
      %p50 = scmp.ne.s32.totalorder %s39, %s40
      %p51 = scmp.eq.s32.totalorder %s17, 0
      %p52 = por %p50, %p51
      %p53 = scmp.ne.s32.totalorder %s39, %s40
      %p54 = scmp.eq.s32.totalorder %s18, 1
      %p55 = por %p53, %p54
      %p57 = scmp.ne.s32.totalorder %s40, %s56
      %p58 = scmp.eq.s32.totalorder %s18, 0
      %p59 = por %p57, %p58
      %s61 = sadd.s32 %s60, 1
      %p64 = scmp.eq.s32.totalorder %s12, 1
      %p65 = scmp.ne.s32.totalorder %s60, %s62
      %p66 = scmp.eq.s32.totalorder %s12, 0
      %p67 = por %p65, %p66
      %p68 = scmp.ne.s32.totalorder %s60, %s62
      %p69 = scmp.eq.s32.totalorder %s17, 1
      %p70 = por %p68, %p69
      %p71 = scmp.ne.s32.totalorder %s62, %s63
      %p72 = scmp.eq.s32.totalorder %s17, 0
      %p73 = por %p71, %p72
      %p74 = scmp.ne.s32.totalorder %s62, %s63
      %p75 = scmp.eq.s32.totalorder %s18, 1
      %p76 = por %p74, %p75
      %p78 = scmp.ne.s32.totalorder %s63, %s77
      %p79 = scmp.eq.s32.totalorder %s18, 0
      %p80 = por %p78, %p79
      %s82 = sadd.s32 %s81, 1
      %p85 = scmp.eq.s32.totalorder %s12, 1
      %p86 = scmp.ne.s32.totalorder %s81, %s83
      %p87 = scmp.eq.s32.totalorder %s12, 0
      %p88 = por %p86, %p87
      %p89 = scmp.ne.s32.totalorder %s81, %s83
      %p90 = scmp.eq.s32.totalorder %s17, 1
      %p91 = por %p89, %p90
      %p92 = scmp.ne.s32.totalorder %s83, %s84
      %p93 = scmp.eq.s32.totalorder %s17, 0
      %p94 = por %p92, %p93
      %p95 = scmp.ne.s32.totalorder %s83, %s84
      %p96 = scmp.eq.s32.totalorder %s18, 1
      %p97 = por %p95, %p96
      %p99 = scmp.ne.s32.totalorder %s84, %s98
      %p100 = scmp.eq.s32.totalorder %s18, 0
      %p101 = por %p99, %p100
      %s102 = ssub.s32 %s19, %s31
      %s103 = ssub.s32 %s20, %s27
      %s104 = sor.u32 %s102, %s103
      %p105 = scmp.eq.s32.totalorder %s104, 0
      %s107 = sadd.s32 %s106, 1
      %s108 = scalar_select %p105, %s106, %s107
      %p111 = pneg %p105
      %p112 = scmp.eq.s32.totalorder %s12, 1
      %p113 = por %p111, %p112
      %p114 = scmp.ne.s32.totalorder %s106, %s109
      %p115 = scmp.eq.s32.totalorder %s12, 0
      %p116 = por %p114, %p115
      %p117 = scmp.ne.s32.totalorder %s106, %s109
      %p118 = scmp.eq.s32.totalorder %s17, 1
      %p119 = por %p117, %p118
      %p120 = scmp.ne.s32.totalorder %s109, %s110
      %p121 = scmp.eq.s32.totalorder %s17, 0
      %p122 = por %p120, %p121
      %p123 = scmp.ne.s32.totalorder %s109, %s110
      %p124 = scmp.eq.s32.totalorder %s18, 1
      %p125 = por %p123, %p124
      %p127 = scmp.ne.s32.totalorder %s110, %s126
      %p128 = scmp.eq.s32.totalorder %s18, 0
      %p129 = por %p127, %p128
      %p130 = scmp.le.s32.totalorder 1, %s12
      %p131 = scmp.lt.s32.totalorder %s12, 3
      %p132 = pnand %p130, %p131
      %p133 = pneg %p132
      // Predicated region
      $region9: #{tpu_custom_call.1} parent=5 // pred_check
        _
      $region10: #{tpu_custom_call.1} parent=5 // pred_check_branch
        %135 = sbr.rel (%p132) target = $region12
      $region11: #{tpu_custom_call.1} parent=5 // pred_region
        %s136 = ssub.s32 %s12, 1
        // Predicated region
        $region13: #{tpu_custom_call.1} parent=11 // pred_check
          %p137 = pneg %p73
        $region14: #{tpu_custom_call.1} parent=11 // pred_check_branch
          %139 = sbr.rel (%p137) target = $region16
        $region15: #{tpu_custom_call.1} parent=11 // pred_region
          _
        $region16: #{tpu_custom_call.1} parent=11 // pred_fallthru
          _
        // Predicated region
        $region17: #{tpu_custom_call.1} parent=11 // pred_check
          %p140 = pneg %p94
        $region18: #{tpu_custom_call.1} parent=11 // pred_check_branch
          %142 = sbr.rel (%p140) target = $region20
        $region19: #{tpu_custom_call.1} parent=11 // pred_region
          _
        $region20: #{tpu_custom_call.1} parent=11 // pred_fallthru
          _
      $region12: #{tpu_custom_call.1} parent=5 // pred_fallthru
        _
      %p143 = scmp.lt.s32.totalorder %s12, 2
      // Predicated region
      $region21: #{tpu_custom_call.1} parent=5 // pred_check
        %p144 = pneg %p143
      $region22: #{tpu_custom_call.1} parent=5 // pred_check_branch
        %146 = sbr.rel (%p144) target = $region24
      $region23: #{tpu_custom_call.1} parent=5 // pred_region
        // Predicated region
        $region25: #{tpu_custom_call.1} parent=23 // pred_check
          %p147 = pneg %p46
        $region26: #{tpu_custom_call.1} parent=23 // pred_check_branch
          %149 = sbr.rel (%p147) target = $region28
        $region27: #{tpu_custom_call.1} parent=23 // pred_region
          %s150 = smul.u32 32, %s20
          %p151 = scmp.lt.s32.totalorder %s19, 1
          %s152 = scalar_select %p151, %s19, 1
          %p153 = scmp.lt.s32.totalorder %s150, 31
          %s154 = scalar_select %p153, %s150, 31
          %s155 = smul.addr %s152, 32
          %s156 = sadd.s32 %s154, %s155
          %s157 = smul.addr %s156, 4
          %s158 = scalar_lea.vmem %s0, %s157
          %s159 = smul.u32 32, %s20
        $region28: #{tpu_custom_call.1} parent=23 // pred_fallthru
          _
      $region24: #{tpu_custom_call.1} parent=5 // pred_fallthru
        _
      %p160 = scmp.le.s32.totalorder 1, %s12
      %p161 = scmp.lt.s32.totalorder %s12, 3
      %p162 = pnand %p160, %p161
      %p163 = pneg %p162
      // Predicated region
      $region29: #{tpu_custom_call.1} parent=5 // pred_check
        _
      $region30: #{tpu_custom_call.1} parent=5 // pred_check_branch
        %165 = sbr.rel (%p162) target = $region32
      $region31: #{tpu_custom_call.1} parent=5 // pred_region
        %s166 = ssub.s32 %s12, 1
        %s167 = smul.u32 32, %s22
        %p168 = scmp.lt.s32.totalorder %s21, 1
        %s169 = scalar_select %p168, %s21, 1
        %p170 = scmp.lt.s32.totalorder %s167, 31
        %s171 = scalar_select %p170, %s167, 31
        %s172 = smul.addr %s169, 32
        %s173 = sadd.s32 %s171, %s172
        %s174 = smul.addr %s173, 4
        %s175 = scalar_lea.vmem %s0, %s174
        %p176 = pneg %p52
        %p177 = pneg %p49
        %p178 = pneg %p73
        %p179 = pneg %p70
        %p180 = pneg %p94
        %p181 = pneg %p91
        %p182 = pneg %p122
        %p183 = pneg %p119
        %s184 = sand.u32 %s109, 1
        %s185 = scalar_lea.sflag [#allocation3], %s184
        %s186 = sand.u32 %s109, 1
        %s187 = smul.addr %s186, 128
        %s188 = scalar_lea.vmem [#allocation2], %s187
        %s189 = smul.u32 32, %s22
        %p190 = scmp.lt.s32.totalorder %s21, 1
        %s191 = scalar_select %p190, %s21, 1
        %p192 = scmp.lt.s32.totalorder %s189, 31
        %s193 = scalar_select %p192, %s189, 31
        %s194 = smul.addr %s191, 32
        %s195 = sadd.s32 %s193, %s194
        %s196 = smul.addr %s195, 4
        %s197 = scalar_lea.vmem %s0, %s196
        %s198 = smul.u32 32, %s22
        %s199 = smul.u32 32, %s22
        %v201 = vld [vmem:[%s197] sm:$0xf]
        %v202 = vld [vmem:[%s197 + $0x4] sm:$0xf]
        %v203 = vld [vmem:[%s197 + $0x8] sm:$0xf]
        %v204 = vld [vmem:[%s197 + $0xc] sm:$0xf]
        %v205 = vld [vmem:[%s197 + $0x10] sm:$0xf]
        %v206 = vld [vmem:[%s197 + $0x14] sm:$0xf]
        %v207 = vld [vmem:[%s197 + $0x18] sm:$0xf]
        %v208 = vld [vmem:[%s197 + $0x1c] sm:$0xf]
        %v209 = vld [vmem:[%s197 + $0x20] sm:$0xf]
        %v210 = vld [vmem:[%s197 + $0x24] sm:$0xf]
        %v211 = vld [vmem:[%s197 + $0x28] sm:$0xf]
        %v212 = vld [vmem:[%s197 + $0x2c] sm:$0xf]
        %v213 = vld [vmem:[%s197 + $0x30] sm:$0xf]
        %v214 = vld [vmem:[%s197 + $0x34] sm:$0xf]
        %v215 = vld [vmem:[%s197 + $0x38] sm:$0xf]
        %v216 = vld [vmem:[%s197 + $0x3c] sm:$0xf]
        %v217 = vld [vmem:[%s197 + $0x40] sm:$0xf]
        %v218 = vld [vmem:[%s197 + $0x44] sm:$0xf]
        %v219 = vld [vmem:[%s197 + $0x48] sm:$0xf]
        %v220 = vld [vmem:[%s197 + $0x4c] sm:$0xf]
        %v221 = vld [vmem:[%s197 + $0x50] sm:$0xf]
        %v222 = vld [vmem:[%s197 + $0x54] sm:$0xf]
        %v223 = vld [vmem:[%s197 + $0x58] sm:$0xf]
        %v224 = vld [vmem:[%s197 + $0x5c] sm:$0xf]
        %v225 = vld [vmem:[%s197 + $0x60] sm:$0xf]
        %v226 = vld [vmem:[%s197 + $0x64] sm:$0xf]
        %v227 = vld [vmem:[%s197 + $0x68] sm:$0xf]
        %v228 = vld [vmem:[%s197 + $0x6c] sm:$0xf]
        %v229 = vld [vmem:[%s197 + $0x70] sm:$0xf]
        %v230 = vld [vmem:[%s197 + $0x74] sm:$0xf]
        %v231 = vld [vmem:[%s197 + $0x78] sm:$0xf]
        %v232 = vld [vmem:[%s197 + $0x7c] sm:$0xf]
        %v233 = vld [vmem:[%s1] sm:$0xf]
        %v234 = vld [vmem:[%s1 + $0x4] sm:$0xf]
        %v235 = vld [vmem:[%s1 + $0x8] sm:$0xf]
        %v236 = vld [vmem:[%s1 + $0xc] sm:$0xf]
        %v237 = vld [vmem:[%s1 + $0x10] sm:$0x3]
        %v238 = vld [vmem:[%s2] sm:$0x1]
        %v240 = vperm.slane %v238, 0
        %v274 = vunpack.c.l.b16 %v201
        %v275 = vunpack.c.l.b16 %v202
        %v276 = vunpack.c.l.b16 %v203
        %v277 = vunpack.c.l.b16 %v204
        %v278 = vunpack.c.l.b16 %v205
        %v279 = vunpack.c.l.b16 %v206
        %v280 = vunpack.c.l.b16 %v207
        %v281 = vunpack.c.l.b16 %v208
        %v282 = vunpack.c.l.b16 %v209
        %v283 = vunpack.c.l.b16 %v210
        %v284 = vunpack.c.l.b16 %v211
        %v285 = vunpack.c.l.b16 %v212
        %v286 = vunpack.c.l.b16 %v213
        %v287 = vunpack.c.l.b16 %v214
        %v288 = vunpack.c.l.b16 %v215
        %v289 = vunpack.c.l.b16 %v216
        %v290 = vunpack.c.l.b16 %v217
        %v291 = vunpack.c.l.b16 %v218
        %v292 = vunpack.c.l.b16 %v219
        %v293 = vunpack.c.l.b16 %v220
        %v294 = vunpack.c.l.b16 %v221
        %v295 = vunpack.c.l.b16 %v222
        %v296 = vunpack.c.l.b16 %v223
        %v297 = vunpack.c.l.b16 %v224
        %v298 = vunpack.c.l.b16 %v225
        %v299 = vunpack.c.l.b16 %v226
        %v300 = vunpack.c.l.b16 %v227
        %v301 = vunpack.c.l.b16 %v228
        %v302 = vunpack.c.l.b16 %v229
        %v303 = vunpack.c.l.b16 %v230
        %v304 = vunpack.c.l.b16 %v231
        %v305 = vunpack.c.l.b16 %v232
        %v306 = vpack.c.b16 %v275, %v274
        %v307 = vpack.c.b16 %v277, %v276
        %v308 = vpack.c.b16 %v279, %v278
        %v309 = vpack.c.b16 %v281, %v280
        %v310 = vpack.c.b16 %v283, %v282
        %v311 = vpack.c.b16 %v285, %v284
        %v312 = vpack.c.b16 %v287, %v286
        %v313 = vpack.c.b16 %v289, %v288
        %v314 = vpack.c.b16 %v291, %v290
        %v315 = vpack.c.b16 %v293, %v292
        %v316 = vpack.c.b16 %v295, %v294
        %v317 = vpack.c.b16 %v297, %v296
        %v318 = vpack.c.b16 %v299, %v298
        %v319 = vpack.c.b16 %v301, %v300
        %v320 = vpack.c.b16 %v303, %v302
        %v321 = vpack.c.b16 %v305, %v304
        %v327 = vunpack.c.l.b16 %v233
        %v328 = vunpack.c.l.b16 %v234
        %v329 = vunpack.c.l.b16 %v235
        %v330 = vunpack.c.l.b16 %v236
        %v331 = vunpack.c.l.b16 %v237
        %v332 = vpack.c.b16 %v328, %v327
        %v333 = vpack.c.b16 %v330, %v329
        %v334 = vpack.c.b16 %v331, %v331
        %vm337 = vcmask 293888
        %v339 = vsel %vm337, %v306, 0
        %v342 = vsel %vm337, %v307, 0
        %v345 = vsel %vm337, %v308, 0
        %v348 = vsel %vm337, %v309, 0
        %v351 = vsel %vm337, %v310, 0
        %v354 = vsel %vm337, %v311, 0
        %v357 = vsel %vm337, %v312, 0
        %v360 = vsel %vm337, %v313, 0
        %v363 = vsel %vm337, %v314, 0
        %v366 = vsel %vm337, %v315, 0
        %v369 = vsel %vm337, %v316, 0
        %v372 = vsel %vm337, %v317, 0
        %v375 = vsel %vm337, %v318, 0
        %v378 = vsel %vm337, %v319, 0
        %v381 = vsel %vm337, %v320, 0
        %v384 = vsel %vm337, %v321, 0
        %vm386 = vcmask 1041408
        %v388 = vsel %vm386, %v334, 0
        %390 = vmatpush.bf16.msra.mxu0 0
        %391 = vmatpush.bf16.msra.mxu0 0
        %392 = vmatpush.bf16.msra.mxu0 0
        %393 = vmatpush.bf16.msra.mxu0 0
        %394 = vmatpush.bf16.msra.mxu0 0
        %395 = vmatpush.bf16.msra.mxu0 %v388
        %396 = vmatpush.bf16.msra.mxu0 %v333
        %397 = vmatpush.bf16.msra.mxu0 %v332
        %398 = vmatmul.bf16.gmra.mxu0 %v339
        %v399 = vpop.f32.mrf.mxu0
        %v400 = vadd.f32 %v240, %v399
        %v401 = vpop.f32.mrf.mxu0
        %v402 = vadd.f32 %v240, %v401
        %403 = vmatmul.bf16.gmra.mxu0 %v342
        %v404 = vpop.f32.mrf.mxu0
        %v405 = vadd.f32 %v240, %v404
        %v406 = vpop.f32.mrf.mxu0
        %v407 = vadd.f32 %v240, %v406
        %408 = vmatmul.bf16.gmra.mxu0 %v345
        %v409 = vpop.f32.mrf.mxu0
        %v410 = vadd.f32 %v240, %v409
        %v411 = vpop.f32.mrf.mxu0
        %v412 = vadd.f32 %v240, %v411
        %413 = vmatmul.bf16.gmra.mxu0 %v348
        %v414 = vpop.f32.mrf.mxu0
        %v415 = vadd.f32 %v240, %v414
        %v416 = vpop.f32.mrf.mxu0
        %v417 = vadd.f32 %v240, %v416
        %418 = vmatmul.bf16.gmra.mxu0 %v351
        %v419 = vpop.f32.mrf.mxu0
        %v420 = vadd.f32 %v240, %v419
        %v421 = vpop.f32.mrf.mxu0
        %v422 = vadd.f32 %v240, %v421
        %423 = vmatmul.bf16.gmra.mxu0 %v354
        %v424 = vpop.f32.mrf.mxu0
        %v425 = vadd.f32 %v240, %v424
        %v426 = vpop.f32.mrf.mxu0
        %v427 = vadd.f32 %v240, %v426
        %428 = vmatmul.bf16.gmra.mxu0 %v357
        %v429 = vpop.f32.mrf.mxu0
        %v430 = vadd.f32 %v240, %v429
        %v431 = vpop.f32.mrf.mxu0
        %v432 = vadd.f32 %v240, %v431
        %433 = vmatmul.bf16.gmra.mxu0 %v360
        %v434 = vpop.f32.mrf.mxu0
        %v435 = vadd.f32 %v240, %v434
        %v436 = vpop.f32.mrf.mxu0
        %v437 = vadd.f32 %v240, %v436
        %438 = vmatmul.bf16.gmra.mxu0 %v363
        %v439 = vpop.f32.mrf.mxu0
        %v440 = vadd.f32 %v240, %v439
        %v441 = vpop.f32.mrf.mxu0
        %v442 = vadd.f32 %v240, %v441
        %443 = vmatmul.bf16.gmra.mxu0 %v366
        %v444 = vpop.f32.mrf.mxu0
        %v445 = vadd.f32 %v240, %v444
        %v446 = vpop.f32.mrf.mxu0
        %v447 = vadd.f32 %v240, %v446
        %448 = vmatmul.bf16.gmra.mxu0 %v369
        %v449 = vpop.f32.mrf.mxu0
        %v450 = vadd.f32 %v240, %v449
        %v451 = vpop.f32.mrf.mxu0
        %v452 = vadd.f32 %v240, %v451
        %453 = vmatmul.bf16.gmra.mxu0 %v372
        %v454 = vpop.f32.mrf.mxu0
        %v455 = vadd.f32 %v240, %v454
        %v456 = vpop.f32.mrf.mxu0
        %v457 = vadd.f32 %v240, %v456
        %458 = vmatmul.bf16.gmra.mxu0 %v375
        %v459 = vpop.f32.mrf.mxu0
        %v460 = vadd.f32 %v240, %v459
        %v461 = vpop.f32.mrf.mxu0
        %v462 = vadd.f32 %v240, %v461
        %463 = vmatmul.bf16.gmra.mxu0 %v378
        %v464 = vpop.f32.mrf.mxu0
        %v465 = vadd.f32 %v240, %v464
        %v466 = vpop.f32.mrf.mxu0
        %v467 = vadd.f32 %v240, %v466
        %468 = vmatmul.bf16.gmra.mxu0 %v381
        %v469 = vpop.f32.mrf.mxu0
        %v470 = vadd.f32 %v240, %v469
        %v471 = vpop.f32.mrf.mxu0
        %v472 = vadd.f32 %v240, %v471
        %473 = vmatmul.bf16.gmra.mxu0 %v384
        %v474 = vpop.f32.mrf.mxu0
        %v475 = vadd.f32 %v240, %v474
        %v476 = vpop.f32.mrf.mxu0
        %v477 = vadd.f32 %v240, %v476
        %478 = vdwg.mxu0
        %v479 = vmul.f32 %v400, 0.5
        %v480 = vmul.f32 %v402, 0.5
        %v481 = vmul.f32 %v405, 0.5
        %v482 = vmul.f32 %v407, 0.5
        %v483 = vmul.f32 %v410, 0.5
        %v484 = vmul.f32 %v412, 0.5
        %v485 = vmul.f32 %v415, 0.5
        %v486 = vmul.f32 %v417, 0.5
        %v487 = vmul.f32 %v420, 0.5
        %v488 = vmul.f32 %v422, 0.5
        %v489 = vmul.f32 %v425, 0.5
        %v490 = vmul.f32 %v427, 0.5
        %v491 = vmul.f32 %v430, 0.5
        %v492 = vmul.f32 %v432, 0.5
        %v493 = vmul.f32 %v435, 0.5
        %v494 = vmul.f32 %v437, 0.5
        %v495 = vmul.f32 %v440, 0.5
        %v496 = vmul.f32 %v442, 0.5
        %v497 = vmul.f32 %v445, 0.5
        %v498 = vmul.f32 %v447, 0.5
        %v499 = vmul.f32 %v450, 0.5
        %v500 = vmul.f32 %v452, 0.5
        %v501 = vmul.f32 %v455, 0.5
        %v502 = vmul.f32 %v457, 0.5
        %v503 = vmul.f32 %v460, 0.5
        %v504 = vmul.f32 %v462, 0.5
        %v505 = vmul.f32 %v465, 0.5
        %v506 = vmul.f32 %v467, 0.5
        %v507 = vmul.f32 %v470, 0.5
        %v508 = vmul.f32 %v472, 0.5
        %v509 = vmul.f32 %v475, 0.5
        %v510 = vmul.f32 %v477, 0.5
        %v511 = vtanh.pop %v479
        %v512 = vtanh.pop %v480
        %v513 = vtanh.pop %v481
        %v514 = vtanh.pop %v482
        %v515 = vtanh.pop %v483
        %v516 = vtanh.pop %v484
        %v517 = vtanh.pop %v485
        %v518 = vtanh.pop %v486
        %v519 = vtanh.pop %v487
        %v520 = vtanh.pop %v488
        %v521 = vtanh.pop %v489
        %v522 = vtanh.pop %v490
        %v523 = vtanh.pop %v491
        %v524 = vtanh.pop %v492
        %v525 = vtanh.pop %v493
        %v526 = vtanh.pop %v494
        %v527 = vtanh.pop %v495
        %v528 = vtanh.pop %v496
        %v529 = vtanh.pop %v497
        %v530 = vtanh.pop %v498
        %v531 = vtanh.pop %v499
        %v532 = vtanh.pop %v500
        %v533 = vtanh.pop %v501
        %v534 = vtanh.pop %v502
        %v535 = vtanh.pop %v503
        %v536 = vtanh.pop %v504
        %v537 = vtanh.pop %v505
        %v538 = vtanh.pop %v506
        %v539 = vtanh.pop %v507
        %v540 = vtanh.pop %v508
        %v541 = vtanh.pop %v509
        %v542 = vtanh.pop %v510
        %v543 = vadd.f32 %v511, 1.0
        %v544 = vadd.f32 %v512, 1.0
        %v545 = vadd.f32 %v513, 1.0
        %v546 = vadd.f32 %v514, 1.0
        %v547 = vadd.f32 %v515, 1.0
        %v548 = vadd.f32 %v516, 1.0
        %v549 = vadd.f32 %v517, 1.0
        %v550 = vadd.f32 %v518, 1.0
        %v551 = vadd.f32 %v519, 1.0
        %v552 = vadd.f32 %v520, 1.0
        %v553 = vadd.f32 %v521, 1.0
        %v554 = vadd.f32 %v522, 1.0
        %v555 = vadd.f32 %v523, 1.0
        %v556 = vadd.f32 %v524, 1.0
        %v557 = vadd.f32 %v525, 1.0
        %v558 = vadd.f32 %v526, 1.0
        %v559 = vadd.f32 %v527, 1.0
        %v560 = vadd.f32 %v528, 1.0
        %v561 = vadd.f32 %v529, 1.0
        %v562 = vadd.f32 %v530, 1.0
        %v563 = vadd.f32 %v531, 1.0
        %v564 = vadd.f32 %v532, 1.0
        %v565 = vadd.f32 %v533, 1.0
        %v566 = vadd.f32 %v534, 1.0
        %v567 = vadd.f32 %v535, 1.0
        %v568 = vadd.f32 %v536, 1.0
        %v569 = vadd.f32 %v537, 1.0
        %v570 = vadd.f32 %v538, 1.0
        %v571 = vadd.f32 %v539, 1.0
        %v572 = vadd.f32 %v540, 1.0
        %v573 = vadd.f32 %v541, 1.0
        %v574 = vadd.f32 %v542, 1.0
        %v575 = vmul.f32 %v479, %v543
        %v576 = vmul.f32 %v480, %v544
        %v577 = vmul.f32 %v481, %v545
        %v578 = vmul.f32 %v482, %v546
        %v579 = vmul.f32 %v483, %v547
        %v580 = vmul.f32 %v484, %v548
        %v581 = vmul.f32 %v485, %v549
        %v582 = vmul.f32 %v486, %v550
        %v583 = vmul.f32 %v487, %v551
        %v584 = vmul.f32 %v488, %v552
        %v585 = vmul.f32 %v489, %v553
        %v586 = vmul.f32 %v490, %v554
        %v587 = vmul.f32 %v491, %v555
        %v588 = vmul.f32 %v492, %v556
        %v589 = vmul.f32 %v493, %v557
        %v590 = vmul.f32 %v494, %v558
        %v591 = vmul.f32 %v495, %v559
        %v592 = vmul.f32 %v496, %v560
        %v593 = vmul.f32 %v497, %v561
        %v594 = vmul.f32 %v498, %v562
        %v595 = vmul.f32 %v499, %v563
        %v596 = vmul.f32 %v500, %v564
        %v597 = vmul.f32 %v501, %v565
        %v598 = vmul.f32 %v502, %v566
        %v599 = vmul.f32 %v503, %v567
        %v600 = vmul.f32 %v504, %v568
        %v601 = vmul.f32 %v505, %v569
        %v602 = vmul.f32 %v506, %v570
        %v603 = vmul.f32 %v507, %v571
        %v604 = vmul.f32 %v508, %v572
        %v605 = vmul.f32 %v509, %v573
        %v606 = vmul.f32 %v510, %v574
        %v607 = vpack.c.bf16 %v575, %v575
        %v608 = vpack.c.bf16 %v576, %v576
        %v609 = vpack.c.bf16 %v577, %v577
        %v610 = vpack.c.bf16 %v578, %v578
        %v611 = vpack.c.bf16 %v579, %v579
        %v612 = vpack.c.bf16 %v580, %v580
        %v613 = vpack.c.bf16 %v581, %v581
        %v614 = vpack.c.bf16 %v582, %v582
        %v615 = vpack.c.bf16 %v583, %v583
        %v616 = vpack.c.bf16 %v584, %v584
        %v617 = vpack.c.bf16 %v585, %v585
        %v618 = vpack.c.bf16 %v586, %v586
        %v619 = vpack.c.bf16 %v587, %v587
        %v620 = vpack.c.bf16 %v588, %v588
        %v621 = vpack.c.bf16 %v589, %v589
        %v622 = vpack.c.bf16 %v590, %v590
        %v623 = vpack.c.bf16 %v591, %v591
        %v624 = vpack.c.bf16 %v592, %v592
        %v625 = vpack.c.bf16 %v593, %v593
        %v626 = vpack.c.bf16 %v594, %v594
        %v627 = vpack.c.bf16 %v595, %v595
        %v628 = vpack.c.bf16 %v596, %v596
        %v629 = vpack.c.bf16 %v597, %v597
        %v630 = vpack.c.bf16 %v598, %v598
        %v631 = vpack.c.bf16 %v599, %v599
        %v632 = vpack.c.bf16 %v600, %v600
        %v633 = vpack.c.bf16 %v601, %v601
        %v634 = vpack.c.bf16 %v602, %v602
        %v635 = vpack.c.bf16 %v603, %v603
        %v636 = vpack.c.bf16 %v604, %v604
        %v637 = vpack.c.bf16 %v605, %v605
        %v638 = vpack.c.bf16 %v606, %v606
        %639 = vst [vmem:[%s188] sm:$0xf] %v607
        %640 = vst [vmem:[%s188 + $0x4] sm:$0xf] %v608
        %641 = vst [vmem:[%s188 + $0x8] sm:$0xf] %v609
        %642 = vst [vmem:[%s188 + $0xc] sm:$0xf] %v610
        %643 = vst [vmem:[%s188 + $0x10] sm:$0xf] %v611
        %644 = vst [vmem:[%s188 + $0x14] sm:$0xf] %v612
        %645 = vst [vmem:[%s188 + $0x18] sm:$0xf] %v613
        %646 = vst [vmem:[%s188 + $0x1c] sm:$0xf] %v614
        %647 = vst [vmem:[%s188 + $0x20] sm:$0xf] %v615
        %648 = vst [vmem:[%s188 + $0x24] sm:$0xf] %v616
        %649 = vst [vmem:[%s188 + $0x28] sm:$0xf] %v617
        %650 = vst [vmem:[%s188 + $0x2c] sm:$0xf] %v618
        %651 = vst [vmem:[%s188 + $0x30] sm:$0xf] %v619
        %652 = vst [vmem:[%s188 + $0x34] sm:$0xf] %v620
        %653 = vst [vmem:[%s188 + $0x38] sm:$0xf] %v621
        %654 = vst [vmem:[%s188 + $0x3c] sm:$0xf] %v622
        %655 = vst [vmem:[%s188 + $0x40] sm:$0xf] %v623
        %656 = vst [vmem:[%s188 + $0x44] sm:$0xf] %v624
        %657 = vst [vmem:[%s188 + $0x48] sm:$0xf] %v625
        %658 = vst [vmem:[%s188 + $0x4c] sm:$0xf] %v626
        %659 = vst [vmem:[%s188 + $0x50] sm:$0xf] %v627
        %660 = vst [vmem:[%s188 + $0x54] sm:$0xf] %v628
        %661 = vst [vmem:[%s188 + $0x58] sm:$0xf] %v629
        %662 = vst [vmem:[%s188 + $0x5c] sm:$0xf] %v630
        %663 = vst [vmem:[%s188 + $0x60] sm:$0xf] %v631
        %664 = vst [vmem:[%s188 + $0x64] sm:$0xf] %v632
        %665 = vst [vmem:[%s188 + $0x68] sm:$0xf] %v633
        %666 = vst [vmem:[%s188 + $0x6c] sm:$0xf] %v634
        %667 = vst [vmem:[%s188 + $0x70] sm:$0xf] %v635
        %668 = vst [vmem:[%s188 + $0x74] sm:$0xf] %v636
        %669 = vst [vmem:[%s188 + $0x78] sm:$0xf] %v637
        %670 = vst [vmem:[%s188 + $0x7c] sm:$0xf] %v638
        %s671 = sand.u32 %s109, 1
        %s672 = scalar_lea.sflag [#allocation3], %s671
        %s673 = sand.u32 %s109, 1
        %s674 = smul.addr %s673, 128
        %s675 = scalar_lea.vmem [#allocation2], %s674
        // Predicated region
        $region33: #{tpu_custom_call.1} parent=31 // pred_check
          %p676 = pneg %p119
        $region34: #{tpu_custom_call.1} parent=31 // pred_check_branch
          %678 = sbr.rel (%p676) target = $region36
        $region35: #{tpu_custom_call.1} parent=31 // pred_region
          %s679 = smul.u32 32, %s22
          %681 = vsyncadd %s672, 0
          %s682 = smul.addr %s21, 32
          %s683 = sadd.s32 %s679, %s682
          %s684 = smul.addr %s683, 4
          %s685 = scalar_lea.hbm %s3, %s684
          %s686 = sshll.u32 %s675, 4
          %s687 = int_to_ptr.vmem [resolvable:$true] %s686
          %s688 = sshll.u32 %s685, 4
          %s689 = int_to_ptr.hbm [resolvable:$true] %s688
          %694 = dma.vmem_to_hbm [thread:$0]  %s687, 2048, %s689, %s672, 64, 64, 4
        $region36: #{tpu_custom_call.1} parent=31 // pred_fallthru
          _
      $region32: #{tpu_custom_call.1} parent=5 // pred_fallthru
        _
      %p695 = scmp.le.s32.totalorder 2, %s12
      // Predicated region
      $region37: #{tpu_custom_call.1} parent=5 // pred_check
        %p696 = pneg %p695
      $region38: #{tpu_custom_call.1} parent=5 // pred_check_branch
        %698 = sbr.rel (%p696) target = $region40
      $region39: #{tpu_custom_call.1} parent=5 // pred_region
        %s699 = ssub.s32 %s12, 2
        // Predicated region
        $region41: #{tpu_custom_call.1} parent=39 // pred_check
          %p700 = pneg %p125
        $region42: #{tpu_custom_call.1} parent=39 // pred_check_branch
          %702 = sbr.rel (%p700) target = $region44
        $region43: #{tpu_custom_call.1} parent=39 // pred_region
          %s703 = sand.u32 %s110, 1
          %s704 = scalar_lea.sflag [#allocation3], %s703
          %s705 = sand.u32 %s110, 1
          %s706 = smul.addr %s705, 128
          %s707 = scalar_lea.vmem [#allocation2], %s706
          %709 = dma.done %s704, 2048
        $region44: #{tpu_custom_call.1} parent=39 // pred_fallthru
          _
      $region40: #{tpu_custom_call.1} parent=5 // pred_fallthru
        _
    $region6: #{tpu_custom_call.1} parent=1 // loop_footer
      %s16 = sadd.s32 1, %s12
    $region7: #{tpu_custom_call.1} parent=1 // loop_footer_branch
      %11 = sbr.rel target = $region3
    $region8: #{tpu_custom_call.1} parent=1 // loop_exit
      _
    %710 = vsyncpa [#allocation3], 1
    %s711 = scalar_lea.sflag [#allocation3], 1
    %712 = vsyncpa %s711, 1

// kernel: tpu_custom_call.1
$region0: #{tpu_custom_call.1}
  #allocation0 [shape = 'u32[]', space=smem, size = 0x4, offset = 0x4, fixed_abs, tag = 'smem constant byte address 0x4 - core index']
  #allocation1 [shape = 'u32[72,128]{1,0:T(1,128)}', space=vmem, size = 0x9000, scoped, tag = 'internal scratch']
  %s0 = inlined_call_operand.vmem [shape: bf16[2,256,36], index: 0, kind: input, shape index: {}]
  %s1 = inlined_call_operand.vmem [shape: bf16[36,128], index: 1, kind: input, shape index: {}]
  %s2 = inlined_call_operand.vmem [shape: f32[1,128], index: 2, kind: input, shape index: {}]
  %s3 = inlined_call_operand.hbm [shape: bf16[2,256,128], index: 3, kind: output, shape index: {}]
  %s4 = sld [smem:[#allocation0]]
  $region45: #{tpu_custom_call.1} parent=0
    _
  %s6 = ssub.s32 1, %s4
  %s7 = scalar_select 0, %s6, %s4
  $region1: #{tpu_custom_call.1} parent=0
    #allocation2 [shape = 'u8[131072]{0}', space=vmem, size = 0x20000, scoped, tag = 'output window, operand 0']
    #allocation3 [shape = 's32[2]{0}', space=sflag, size = 0x8, scoped, tag = 'scoped memory for tpu_custom_call.1']
    %8 = vsyncpa [#allocation3], 0
    %s9 = scalar_lea.sflag [#allocation3], 1
    %10 = vsyncpa %s9, 0
    loop: start=0, step=1, limit=4
    $region2: #{tpu_custom_call.1} parent=1 // loop_pre_header
      _
    $region3: #{tpu_custom_call.1} parent=1 // loop_header
      %s12 = sphi 0, %s16
      %p13 = scmp.ge.s32.totalorder %s12, 4
      %s19 = sphi 0, %s31
      %s20 = sphi 0, %s27
      %s21 = sphi 0, %s19
      %s22 = sphi 0, %s20
      %s23 = sphi 0, %s21
      %s24 = sphi 0, %s22
      %s36 = sphi 0, %s38
      %s39 = sphi 0, %s36
      %s40 = sphi 0, %s39
      %s56 = sphi 0, %s40
      %s60 = sphi 0, %s60
      %s62 = sphi 0, %s60
      %s63 = sphi 0, %s62
      %s77 = sphi 0, %s63
      %s81 = sphi 0, %s81
      %s83 = sphi 0, %s81
      %s84 = sphi 0, %s83
      %s98 = sphi 0, %s84
      %s106 = sphi 0, %s108
      %s109 = sphi 0, %s106
      %s110 = sphi 0, %s109
      %s126 = sphi 0, %s110
    $region4: #{tpu_custom_call.1} parent=1 // loop_header_branch
      %15 = sbr.rel (%p13) target = $region8
    $region5: #{tpu_custom_call.1} parent=1 // loop_body
      %s17 = ssub.s32 %s12, 1
      %s18 = ssub.s32 %s12, 2
      %s25 = sadd.s32 1, %s20
      %p26 = scmp.ge.s32.totalorder %s25, 1
      %s27 = scalar_select %p26, 0, %s25
      %s28 = sadd.s32 1, %s19
      %s29 = scalar_select %p26, %s28, %s19
      %p30 = scmp.ge.s32.totalorder %s29, 2
      %s31 = scalar_select %p30, 0, %s29
      %s32 = ssub.s32 %s19, %s31
      %s33 = ssub.s32 %s20, %s27
      %s34 = sor.u32 %s32, %s33
      %p35 = scmp.eq.s32.totalorder %s34, 0
      %s37 = sadd.s32 %s36, 1
      %s38 = scalar_select %p35, %s36, %s37
      %p41 = pneg %p35
      %p42 = scmp.eq.s32.totalorder %s12, 1
      %p43 = por %p41, %p42
      %p44 = scmp.ne.s32.totalorder %s36, %s39
      %p45 = scmp.eq.s32.totalorder %s12, 0
      %p46 = por %p44, %p45
      %p47 = scmp.ne.s32.totalorder %s36, %s39
      %p48 = scmp.eq.s32.totalorder %s17, 1
      %p49 = por %p47, %p48
      %p50 = scmp.ne.s32.totalorder %s39, %s40
      %p51 = scmp.eq.s32.totalorder %s17, 0
      %p52 = por %p50, %p51
      %p53 = scmp.ne.s32.totalorder %s39, %s40
      %p54 = scmp.eq.s32.totalorder %s18, 1
      %p55 = por %p53, %p54
      %p57 = scmp.ne.s32.totalorder %s40, %s56
      %p58 = scmp.eq.s32.totalorder %s18, 0
      %p59 = por %p57, %p58
      %s61 = sadd.s32 %s60, 1
      %p64 = scmp.eq.s32.totalorder %s12, 1
      %p65 = scmp.ne.s32.totalorder %s60, %s62
      %p66 = scmp.eq.s32.totalorder %s12, 0
      %p67 = por %p65, %p66
      %p68 = scmp.ne.s32.totalorder %s60, %s62
      %p69 = scmp.eq.s32.totalorder %s17, 1
      %p70 = por %p68, %p69
      %p71 = scmp.ne.s32.totalorder %s62, %s63
      %p72 = scmp.eq.s32.totalorder %s17, 0
      %p73 = por %p71, %p72
      %p74 = scmp.ne.s32.totalorder %s62, %s63
      %p75 = scmp.eq.s32.totalorder %s18, 1
      %p76 = por %p74, %p75
      %p78 = scmp.ne.s32.totalorder %s63, %s77
      %p79 = scmp.eq.s32.totalorder %s18, 0
      %p80 = por %p78, %p79
      %s82 = sadd.s32 %s81, 1
      %p85 = scmp.eq.s32.totalorder %s12, 1
      %p86 = scmp.ne.s32.totalorder %s81, %s83
      %p87 = scmp.eq.s32.totalorder %s12, 0
      %p88 = por %p86, %p87
      %p89 = scmp.ne.s32.totalorder %s81, %s83
      %p90 = scmp.eq.s32.totalorder %s17, 1
      %p91 = por %p89, %p90
      %p92 = scmp.ne.s32.totalorder %s83, %s84
      %p93 = scmp.eq.s32.totalorder %s17, 0
      %p94 = por %p92, %p93
      %p95 = scmp.ne.s32.totalorder %s83, %s84
      %p96 = scmp.eq.s32.totalorder %s18, 1
      %p97 = por %p95, %p96
      %p99 = scmp.ne.s32.totalorder %s84, %s98
      %p100 = scmp.eq.s32.totalorder %s18, 0
      %p101 = por %p99, %p100
      %s102 = ssub.s32 %s19, %s31
      %s103 = ssub.s32 %s20, %s27
      %s104 = sor.u32 %s102, %s103
      %p105 = scmp.eq.s32.totalorder %s104, 0
      %s107 = sadd.s32 %s106, 1
      %s108 = scalar_select %p105, %s106, %s107
      %p111 = pneg %p105
      %p112 = scmp.eq.s32.totalorder %s12, 1
      %p113 = por %p111, %p112
      %p114 = scmp.ne.s32.totalorder %s106, %s109
      %p115 = scmp.eq.s32.totalorder %s12, 0
      %p116 = por %p114, %p115
      %p117 = scmp.ne.s32.totalorder %s106, %s109
      %p118 = scmp.eq.s32.totalorder %s17, 1
      %p119 = por %p117, %p118
      %p120 = scmp.ne.s32.totalorder %s109, %s110
      %p121 = scmp.eq.s32.totalorder %s17, 0
      %p122 = por %p120, %p121
      %p123 = scmp.ne.s32.totalorder %s109, %s110
      %p124 = scmp.eq.s32.totalorder %s18, 1
      %p125 = por %p123, %p124
      %p127 = scmp.ne.s32.totalorder %s110, %s126
      %p128 = scmp.eq.s32.totalorder %s18, 0
      %p129 = por %p127, %p128
      %p130 = scmp.le.s32.totalorder 1, %s12
      %p131 = scmp.lt.s32.totalorder %s12, 3
      %p132 = pnand %p130, %p131
      %p133 = pneg %p132
      // Predicated region
      $region9: #{tpu_custom_call.1} parent=5 // pred_check
        _
      $region10: #{tpu_custom_call.1} parent=5 // pred_check_branch
        %135 = sbr.rel (%p132) target = $region12
      $region11: #{tpu_custom_call.1} parent=5 // pred_region
        %s136 = ssub.s32 %s12, 1
        // Predicated region
        $region13: #{tpu_custom_call.1} parent=11 // pred_check
          %p137 = pneg %p73
        $region14: #{tpu_custom_call.1} parent=11 // pred_check_branch
          %139 = sbr.rel (%p137) target = $region16
        $region15: #{tpu_custom_call.1} parent=11 // pred_region
          _
        $region16: #{tpu_custom_call.1} parent=11 // pred_fallthru
          _
        // Predicated region
        $region17: #{tpu_custom_call.1} parent=11 // pred_check
          %p140 = pneg %p94
        $region18: #{tpu_custom_call.1} parent=11 // pred_check_branch
          %142 = sbr.rel (%p140) target = $region20
        $region19: #{tpu_custom_call.1} parent=11 // pred_region
          _
        $region20: #{tpu_custom_call.1} parent=11 // pred_fallthru
          _
      $region12: #{tpu_custom_call.1} parent=5 // pred_fallthru
        _
      %p143 = scmp.lt.s32.totalorder %s12, 2
      // Predicated region
      $region21: #{tpu_custom_call.1} parent=5 // pred_check
        %p144 = pneg %p143
      $region22: #{tpu_custom_call.1} parent=5 // pred_check_branch
        %146 = sbr.rel (%p144) target = $region24
      $region23: #{tpu_custom_call.1} parent=5 // pred_region
        // Predicated region
        $region25: #{tpu_custom_call.1} parent=23 // pred_check
          %p147 = pneg %p46
        $region26: #{tpu_custom_call.1} parent=23 // pred_check_branch
          %149 = sbr.rel (%p147) target = $region28
        $region27: #{tpu_custom_call.1} parent=23 // pred_region
          %s150 = smul.u32 32, %s20
          %p151 = scmp.lt.s32.totalorder %s19, 1
          %s152 = scalar_select %p151, %s19, 1
          %p153 = scmp.lt.s32.totalorder %s150, 31
          %s154 = scalar_select %p153, %s150, 31
          %s155 = smul.addr %s152, 32
          %s156 = sadd.s32 %s154, %s155
          %s157 = smul.addr %s156, 4
          %s158 = scalar_lea.vmem %s0, %s157
          %s159 = smul.u32 32, %s20
        $region28: #{tpu_custom_call.1} parent=23 // pred_fallthru
          _
      $region24: #{tpu_custom_call.1} parent=5 // pred_fallthru
        _
      %p160 = scmp.le.s32.totalorder 1, %s12
      %p161 = scmp.lt.s32.totalorder %s12, 3
      %p162 = pnand %p160, %p161
      %p163 = pneg %p162
      // Predicated region
      $region29: #{tpu_custom_call.1} parent=5 // pred_check
        _
      $region30: #{tpu_custom_call.1} parent=5 // pred_check_branch
        %165 = sbr.rel (%p162) target = $region32
      $region31: #{tpu_custom_call.1} parent=5 // pred_region
        %s166 = ssub.s32 %s12, 1
        %s167 = smul.u32 32, %s22
        %p168 = scmp.lt.s32.totalorder %s21, 1
        %s169 = scalar_select %p168, %s21, 1
        %p170 = scmp.lt.s32.totalorder %s167, 31
        %s171 = scalar_select %p170, %s167, 31
        %s172 = smul.addr %s169, 32
        %s173 = sadd.s32 %s171, %s172
        %s174 = smul.addr %s173, 4
        %s175 = scalar_lea.vmem %s0, %s174
        %p176 = pneg %p52
        %p177 = pneg %p49
        %p178 = pneg %p73
        %p179 = pneg %p70
        %p180 = pneg %p94
        %p181 = pneg %p91
        %p182 = pneg %p122
        %p183 = pneg %p119
        %s184 = sand.u32 %s109, 1
        %s185 = scalar_lea.sflag [#allocation3], %s184
        %s186 = sand.u32 %s109, 1
        %s187 = smul.addr %s186, 128
        %s188 = scalar_lea.vmem [#allocation2], %s187
        %s189 = smul.u32 32, %s22
        %p190 = scmp.lt.s32.totalorder %s21, 1
        %s191 = scalar_select %p190, %s21, 1
        %p192 = scmp.lt.s32.totalorder %s189, 31
        %s193 = scalar_select %p192, %s189, 31
        %s194 = smul.addr %s191, 32
        %s195 = sadd.s32 %s193, %s194
        %s196 = smul.addr %s195, 4
        %s197 = scalar_lea.vmem %s0, %s196
        %s198 = smul.u32 32, %s22
        %s199 = smul.u32 32, %s22
        %v201 = vld [vmem:[%s197] sm:$0xf]
        %v202 = vld [vmem:[%s197 + $0x4] sm:$0xf]
        %v203 = vld [vmem:[%s197 + $0x8] sm:$0xf]
        %v204 = vld [vmem:[%s197 + $0xc] sm:$0xf]
        %v205 = vld [vmem:[%s197 + $0x10] sm:$0xf]
        %v206 = vld [vmem:[%s197 + $0x14] sm:$0xf]
        %v207 = vld [vmem:[%s197 + $0x18] sm:$0xf]
        %v208 = vld [vmem:[%s197 + $0x1c] sm:$0xf]
        %v209 = vld [vmem:[%s197 + $0x20] sm:$0xf]
        %v210 = vld [vmem:[%s197 + $0x24] sm:$0xf]
        %v211 = vld [vmem:[%s197 + $0x28] sm:$0xf]
        %v212 = vld [vmem:[%s197 + $0x2c] sm:$0xf]
        %v213 = vld [vmem:[%s197 + $0x30] sm:$0xf]
        %v214 = vld [vmem:[%s197 + $0x34] sm:$0xf]
        %v215 = vld [vmem:[%s197 + $0x38] sm:$0xf]
        %v216 = vld [vmem:[%s197 + $0x3c] sm:$0xf]
        %v217 = vld [vmem:[%s197 + $0x40] sm:$0xf]
        %v218 = vld [vmem:[%s197 + $0x44] sm:$0xf]
        %v219 = vld [vmem:[%s197 + $0x48] sm:$0xf]
        %v220 = vld [vmem:[%s197 + $0x4c] sm:$0xf]
        %v221 = vld [vmem:[%s197 + $0x50] sm:$0xf]
        %v222 = vld [vmem:[%s197 + $0x54] sm:$0xf]
        %v223 = vld [vmem:[%s197 + $0x58] sm:$0xf]
        %v224 = vld [vmem:[%s197 + $0x5c] sm:$0xf]
        %v225 = vld [vmem:[%s197 + $0x60] sm:$0xf]
        %v226 = vld [vmem:[%s197 + $0x64] sm:$0xf]
        %v227 = vld [vmem:[%s197 + $0x68] sm:$0xf]
        %v228 = vld [vmem:[%s197 + $0x6c] sm:$0xf]
        %v229 = vld [vmem:[%s197 + $0x70] sm:$0xf]
        %v230 = vld [vmem:[%s197 + $0x74] sm:$0xf]
        %v231 = vld [vmem:[%s197 + $0x78] sm:$0xf]
        %v232 = vld [vmem:[%s197 + $0x7c] sm:$0xf]
        %v233 = vld [vmem:[%s1] sm:$0xf]
        %v234 = vld [vmem:[%s1 + $0x4] sm:$0xf]
        %v235 = vld [vmem:[%s1 + $0x8] sm:$0xf]
        %v236 = vld [vmem:[%s1 + $0xc] sm:$0xf]
        %v237 = vld [vmem:[%s1 + $0x10] sm:$0x3]
        %v238 = vld [vmem:[%s2] sm:$0x1]
        %v240 = vperm.slane %v238, 0
        %v274 = vunpack.c.l.b16 %v201
        %v275 = vunpack.c.l.b16 %v202
        %v276 = vunpack.c.l.b16 %v203
        %v277 = vunpack.c.l.b16 %v204
        %v278 = vunpack.c.l.b16 %v205
        %v279 = vunpack.c.l.b16 %v206
        %v280 = vunpack.c.l.b16 %v207
        %v281 = vunpack.c.l.b16 %v208
        %v282 = vunpack.c.l.b16 %v209
        %v283 = vunpack.c.l.b16 %v210
        %v284 = vunpack.c.l.b16 %v211
        %v285 = vunpack.c.l.b16 %v212
        %v286 = vunpack.c.l.b16 %v213
        %v287 = vunpack.c.l.b16 %v214
        %v288 = vunpack.c.l.b16 %v215
        %v289 = vunpack.c.l.b16 %v216
        %v290 = vunpack.c.l.b16 %v217
        %v291 = vunpack.c.l.b16 %v218
        %v292 = vunpack.c.l.b16 %v219
        %v293 = vunpack.c.l.b16 %v220
        %v294 = vunpack.c.l.b16 %v221
        %v295 = vunpack.c.l.b16 %v222
        %v296 = vunpack.c.l.b16 %v223
        %v297 = vunpack.c.l.b16 %v224
        %v298 = vunpack.c.l.b16 %v225
        %v299 = vunpack.c.l.b16 %v226
        %v300 = vunpack.c.l.b16 %v227
        %v301 = vunpack.c.l.b16 %v228
        %v302 = vunpack.c.l.b16 %v229
        %v303 = vunpack.c.l.b16 %v230
        %v304 = vunpack.c.l.b16 %v231
        %v305 = vunpack.c.l.b16 %v232
        %v306 = vpack.c.b16 %v275, %v274
        %v307 = vpack.c.b16 %v277, %v276
        %v308 = vpack.c.b16 %v279, %v278
        %v309 = vpack.c.b16 %v281, %v280
        %v310 = vpack.c.b16 %v283, %v282
        %v311 = vpack.c.b16 %v285, %v284
        %v312 = vpack.c.b16 %v287, %v286
        %v313 = vpack.c.b16 %v289, %v288
        %v314 = vpack.c.b16 %v291, %v290
        %v315 = vpack.c.b16 %v293, %v292
        %v316 = vpack.c.b16 %v295, %v294
        %v317 = vpack.c.b16 %v297, %v296
        %v318 = vpack.c.b16 %v299, %v298
        %v319 = vpack.c.b16 %v301, %v300
        %v320 = vpack.c.b16 %v303, %v302
        %v321 = vpack.c.b16 %v305, %v304
        %v327 = vunpack.c.l.b16 %v233
        %v328 = vunpack.c.l.b16 %v234
        %v329 = vunpack.c.l.b16 %v235
        %v330 = vunpack.c.l.b16 %v236
        %v331 = vunpack.c.l.b16 %v237
        %v332 = vpack.c.b16 %v328, %v327
        %v333 = vpack.c.b16 %v330, %v329
        %v334 = vpack.c.b16 %v331, %v331
        %vm337 = vcmask 293888
        %v339 = vsel %vm337, %v306, 0
        %v342 = vsel %vm337, %v307, 0
        %v345 = vsel %vm337, %v308, 0
        %v348 = vsel %vm337, %v309, 0
        %v351 = vsel %vm337, %v310, 0
        %v354 = vsel %vm337, %v311, 0
        %v357 = vsel %vm337, %v312, 0
        %v360 = vsel %vm337, %v313, 0
        %v363 = vsel %vm337, %v314, 0
        %v366 = vsel %vm337, %v315, 0
        %v369 = vsel %vm337, %v316, 0
        %v372 = vsel %vm337, %v317, 0
        %v375 = vsel %vm337, %v318, 0
        %v378 = vsel %vm337, %v319, 0
        %v381 = vsel %vm337, %v320, 0
        %v384 = vsel %vm337, %v321, 0
        %vm386 = vcmask 1041408
        %v388 = vsel %vm386, %v334, 0
        %390 = vmatpush.bf16.msra.mxu0 0
        %391 = vmatpush.bf16.msra.mxu0 0
        %392 = vmatpush.bf16.msra.mxu0 0
        %393 = vmatpush.bf16.msra.mxu0 0
        %394 = vmatpush.bf16.msra.mxu0 0
        %395 = vmatpush.bf16.msra.mxu0 %v388
        %396 = vmatpush.bf16.msra.mxu0 %v333
        %397 = vmatpush.bf16.msra.mxu0 %v332
        %398 = vmatmul.bf16.gmra.mxu0 %v339
        %v399 = vpop.f32.mrf.mxu0
        %v400 = vadd.f32 %v240, %v399
        %v401 = vpop.f32.mrf.mxu0
        %v402 = vadd.f32 %v240, %v401
        %403 = vmatmul.bf16.gmra.mxu0 %v342
        %v404 = vpop.f32.mrf.mxu0
        %v405 = vadd.f32 %v240, %v404
        %v406 = vpop.f32.mrf.mxu0
        %v407 = vadd.f32 %v240, %v406
        %408 = vmatmul.bf16.gmra.mxu0 %v345
        %v409 = vpop.f32.mrf.mxu0
        %v410 = vadd.f32 %v240, %v409
        %v411 = vpop.f32.mrf.mxu0
        %v412 = vadd.f32 %v240, %v411
        %413 = vmatmul.bf16.gmra.mxu0 %v348
        %v414 = vpop.f32.mrf.mxu0
        %v415 = vadd.f32 %v240, %v414
        %v416 = vpop.f32.mrf.mxu0
        %v417 = vadd.f32 %v240, %v416
        %418 = vmatmul.bf16.gmra.mxu0 %v351
        %v419 = vpop.f32.mrf.mxu0
        %v420 = vadd.f32 %v240, %v419
        %v421 = vpop.f32.mrf.mxu0
        %v422 = vadd.f32 %v240, %v421
        %423 = vmatmul.bf16.gmra.mxu0 %v354
        %v424 = vpop.f32.mrf.mxu0
        %v425 = vadd.f32 %v240, %v424
        %v426 = vpop.f32.mrf.mxu0
        %v427 = vadd.f32 %v240, %v426
        %428 = vmatmul.bf16.gmra.mxu0 %v357
        %v429 = vpop.f32.mrf.mxu0
        %v430 = vadd.f32 %v240, %v429
        %v431 = vpop.f32.mrf.mxu0
        %v432 = vadd.f32 %v240, %v431
        %433 = vmatmul.bf16.gmra.mxu0 %v360
        %v434 = vpop.f32.mrf.mxu0
        %v435 = vadd.f32 %v240, %v434
        %v436 = vpop.f32.mrf.mxu0
        %v437 = vadd.f32 %v240, %v436
        %438 = vmatmul.bf16.gmra.mxu0 %v363
        %v439 = vpop.f32.mrf.mxu0
        %v440 = vadd.f32 %v240, %v439
        %v441 = vpop.f32.mrf.mxu0
        %v442 = vadd.f32 %v240, %v441
        %443 = vmatmul.bf16.gmra.mxu0 %v366
        %v444 = vpop.f32.mrf.mxu0
        %v445 = vadd.f32 %v240, %v444
        %v446 = vpop.f32.mrf.mxu0
        %v447 = vadd.f32 %v240, %v446
        %448 = vmatmul.bf16.gmra.mxu0 %v369
        %v449 = vpop.f32.mrf.mxu0
        %v450 = vadd.f32 %v240, %v449
        %v451 = vpop.f32.mrf.mxu0
        %v452 = vadd.f32 %v240, %v451
        %453 = vmatmul.bf16.gmra.mxu0 %v372
        %v454 = vpop.f32.mrf.mxu0
        %v455 = vadd.f32 %v240, %v454
        %v456 = vpop.f32.mrf.mxu0
        %v457 = vadd.f32 %v240, %v456
        %458 = vmatmul.bf16.gmra.mxu0 %v375
        %v459 = vpop.f32.mrf.mxu0
        %v460 = vadd.f32 %v240, %v459
        %v461 = vpop.f32.mrf.mxu0
        %v462 = vadd.f32 %v240, %v461
        %463 = vmatmul.bf16.gmra.mxu0 %v378
        %v464 = vpop.f32.mrf.mxu0
        %v465 = vadd.f32 %v240, %v464
        %v466 = vpop.f32.mrf.mxu0
        %v467 = vadd.f32 %v240, %v466
        %468 = vmatmul.bf16.gmra.mxu0 %v381
        %v469 = vpop.f32.mrf.mxu0
        %v470 = vadd.f32 %v240, %v469
        %v471 = vpop.f32.mrf.mxu0
        %v472 = vadd.f32 %v240, %v471
        %473 = vmatmul.bf16.gmra.mxu0 %v384
        %v474 = vpop.f32.mrf.mxu0
        %v475 = vadd.f32 %v240, %v474
        %v476 = vpop.f32.mrf.mxu0
        %v477 = vadd.f32 %v240, %v476
        %478 = vdwg.mxu0
        %v479 = vmul.f32 %v400, 0.5
        %v480 = vmul.f32 %v402, 0.5
        %v481 = vmul.f32 %v405, 0.5
        %v482 = vmul.f32 %v407, 0.5
        %v483 = vmul.f32 %v410, 0.5
        %v484 = vmul.f32 %v412, 0.5
        %v485 = vmul.f32 %v415, 0.5
        %v486 = vmul.f32 %v417, 0.5
        %v487 = vmul.f32 %v420, 0.5
        %v488 = vmul.f32 %v422, 0.5
        %v489 = vmul.f32 %v425, 0.5
        %v490 = vmul.f32 %v427, 0.5
        %v491 = vmul.f32 %v430, 0.5
        %v492 = vmul.f32 %v432, 0.5
        %v493 = vmul.f32 %v435, 0.5
        %v494 = vmul.f32 %v437, 0.5
        %v495 = vmul.f32 %v440, 0.5
        %v496 = vmul.f32 %v442, 0.5
        %v497 = vmul.f32 %v445, 0.5
        %v498 = vmul.f32 %v447, 0.5
        %v499 = vmul.f32 %v450, 0.5
        %v500 = vmul.f32 %v452, 0.5
        %v501 = vmul.f32 %v455, 0.5
        %v502 = vmul.f32 %v457, 0.5
        %v503 = vmul.f32 %v460, 0.5
        %v504 = vmul.f32 %v462, 0.5
        %v505 = vmul.f32 %v465, 0.5
        %v506 = vmul.f32 %v467, 0.5
        %v507 = vmul.f32 %v470, 0.5
        %v508 = vmul.f32 %v472, 0.5
        %v509 = vmul.f32 %v475, 0.5
        %v510 = vmul.f32 %v477, 0.5
        %v511 = vtanh.pop %v479
        %v512 = vtanh.pop %v480
        %v513 = vtanh.pop %v481
        %v514 = vtanh.pop %v482
        %v515 = vtanh.pop %v483
        %v516 = vtanh.pop %v484
        %v517 = vtanh.pop %v485
        %v518 = vtanh.pop %v486
        %v519 = vtanh.pop %v487
        %v520 = vtanh.pop %v488
        %v521 = vtanh.pop %v489
        %v522 = vtanh.pop %v490
        %v523 = vtanh.pop %v491
        %v524 = vtanh.pop %v492
        %v525 = vtanh.pop %v493
        %v526 = vtanh.pop %v494
        %v527 = vtanh.pop %v495
        %v528 = vtanh.pop %v496
        %v529 = vtanh.pop %v497
        %v530 = vtanh.pop %v498
        %v531 = vtanh.pop %v499
        %v532 = vtanh.pop %v500
        %v533 = vtanh.pop %v501
        %v534 = vtanh.pop %v502
        %v535 = vtanh.pop %v503
        %v536 = vtanh.pop %v504
        %v537 = vtanh.pop %v505
        %v538 = vtanh.pop %v506
        %v539 = vtanh.pop %v507
        %v540 = vtanh.pop %v508
        %v541 = vtanh.pop %v509
        %v542 = vtanh.pop %v510
        %v543 = vadd.f32 %v511, 1.0
        %v544 = vadd.f32 %v512, 1.0
        %v545 = vadd.f32 %v513, 1.0
        %v546 = vadd.f32 %v514, 1.0
        %v547 = vadd.f32 %v515, 1.0
        %v548 = vadd.f32 %v516, 1.0
        %v549 = vadd.f32 %v517, 1.0
        %v550 = vadd.f32 %v518, 1.0
        %v551 = vadd.f32 %v519, 1.0
        %v552 = vadd.f32 %v520, 1.0
        %v553 = vadd.f32 %v521, 1.0
        %v554 = vadd.f32 %v522, 1.0
        %v555 = vadd.f32 %v523, 1.0
        %v556 = vadd.f32 %v524, 1.0
        %v557 = vadd.f32 %v525, 1.0
        %v558 = vadd.f32 %v526, 1.0
        %v559 = vadd.f32 %v527, 1.0
        %v560 = vadd.f32 %v528, 1.0
        %v561 = vadd.f32 %v529, 1.0
        %v562 = vadd.f32 %v530, 1.0
        %v563 = vadd.f32 %v531, 1.0
        %v564 = vadd.f32 %v532, 1.0
        %v565 = vadd.f32 %v533, 1.0
        %v566 = vadd.f32 %v534, 1.0
        %v567 = vadd.f32 %v535, 1.0
        %v568 = vadd.f32 %v536, 1.0
        %v569 = vadd.f32 %v537, 1.0
        %v570 = vadd.f32 %v538, 1.0
        %v571 = vadd.f32 %v539, 1.0
        %v572 = vadd.f32 %v540, 1.0
        %v573 = vadd.f32 %v541, 1.0
        %v574 = vadd.f32 %v542, 1.0
        %v575 = vmul.f32 %v479, %v543
        %v576 = vmul.f32 %v480, %v544
        %v577 = vmul.f32 %v481, %v545
        %v578 = vmul.f32 %v482, %v546
        %v579 = vmul.f32 %v483, %v547
        %v580 = vmul.f32 %v484, %v548
        %v581 = vmul.f32 %v485, %v549
        %v582 = vmul.f32 %v486, %v550
        %v583 = vmul.f32 %v487, %v551
        %v584 = vmul.f32 %v488, %v552
        %v585 = vmul.f32 %v489, %v553
        %v586 = vmul.f32 %v490, %v554
        %v587 = vmul.f32 %v491, %v555
        %v588 = vmul.f32 %v492, %v556
        %v589 = vmul.f32 %v493, %v557
        %v590 = vmul.f32 %v494, %v558
        %v591 = vmul.f32 %v495, %v559
        %v592 = vmul.f32 %v496, %v560
        %v593 = vmul.f32 %v497, %v561
        %v594 = vmul.f32 %v498, %v562
        %v595 = vmul.f32 %v499, %v563
        %v596 = vmul.f32 %v500, %v564
        %v597 = vmul.f32 %v501, %v565
        %v598 = vmul.f32 %v502, %v566
        %v599 = vmul.f32 %v503, %v567
        %v600 = vmul.f32 %v504, %v568
        %v601 = vmul.f32 %v505, %v569
        %v602 = vmul.f32 %v506, %v570
        %v603 = vmul.f32 %v507, %v571
        %v604 = vmul.f32 %v508, %v572
        %v605 = vmul.f32 %v509, %v573
        %v606 = vmul.f32 %v510, %v574
        %v607 = vpack.c.bf16 %v575, %v575
        %v608 = vpack.c.bf16 %v576, %v576
        %v609 = vpack.c.bf16 %v577, %v577
        %v610 = vpack.c.bf16 %v578, %v578
        %v611 = vpack.c.bf16 %v579, %v579
        %v612 = vpack.c.bf16 %v580, %v580
        %v613 = vpack.c.bf16 %v581, %v581
        %v614 = vpack.c.bf16 %v582, %v582
        %v615 = vpack.c.bf16 %v583, %v583
        %v616 = vpack.c.bf16 %v584, %v584
        %v617 = vpack.c.bf16 %v585, %v585
        %v618 = vpack.c.bf16 %v586, %v586
        %v619 = vpack.c.bf16 %v587, %v587
        %v620 = vpack.c.bf16 %v588, %v588
        %v621 = vpack.c.bf16 %v589, %v589
        %v622 = vpack.c.bf16 %v590, %v590
        %v623 = vpack.c.bf16 %v591, %v591
        %v624 = vpack.c.bf16 %v592, %v592
        %v625 = vpack.c.bf16 %v593, %v593
        %v626 = vpack.c.bf16 %v594, %v594
        %v627 = vpack.c.bf16 %v595, %v595
        %v628 = vpack.c.bf16 %v596, %v596
        %v629 = vpack.c.bf16 %v597, %v597
        %v630 = vpack.c.bf16 %v598, %v598
        %v631 = vpack.c.bf16 %v599, %v599
        %v632 = vpack.c.bf16 %v600, %v600
        %v633 = vpack.c.bf16 %v601, %v601
        %v634 = vpack.c.bf16 %v602, %v602
        %v635 = vpack.c.bf16 %v603, %v603
        %v636 = vpack.c.bf16 %v604, %v604
        %v637 = vpack.c.bf16 %v605, %v605
        %v638 = vpack.c.bf16 %v606, %v606
        %639 = vst [vmem:[%s188] sm:$0xf] %v607
        %640 = vst [vmem:[%s188 + $0x4] sm:$0xf] %v608
        %641 = vst [vmem:[%s188 + $0x8] sm:$0xf] %v609
        %642 = vst [vmem:[%s188 + $0xc] sm:$0xf] %v610
        %643 = vst [vmem:[%s188 + $0x10] sm:$0xf] %v611
        %644 = vst [vmem:[%s188 + $0x14] sm:$0xf] %v612
        %645 = vst [vmem:[%s188 + $0x18] sm:$0xf] %v613
        %646 = vst [vmem:[%s188 + $0x1c] sm:$0xf] %v614
        %647 = vst [vmem:[%s188 + $0x20] sm:$0xf] %v615
        %648 = vst [vmem:[%s188 + $0x24] sm:$0xf] %v616
        %649 = vst [vmem:[%s188 + $0x28] sm:$0xf] %v617
        %650 = vst [vmem:[%s188 + $0x2c] sm:$0xf] %v618
        %651 = vst [vmem:[%s188 + $0x30] sm:$0xf] %v619
        %652 = vst [vmem:[%s188 + $0x34] sm:$0xf] %v620
        %653 = vst [vmem:[%s188 + $0x38] sm:$0xf] %v621
        %654 = vst [vmem:[%s188 + $0x3c] sm:$0xf] %v622
        %655 = vst [vmem:[%s188 + $0x40] sm:$0xf] %v623
        %656 = vst [vmem:[%s188 + $0x44] sm:$0xf] %v624
        %657 = vst [vmem:[%s188 + $0x48] sm:$0xf] %v625
        %658 = vst [vmem:[%s188 + $0x4c] sm:$0xf] %v626
        %659 = vst [vmem:[%s188 + $0x50] sm:$0xf] %v627
        %660 = vst [vmem:[%s188 + $0x54] sm:$0xf] %v628
        %661 = vst [vmem:[%s188 + $0x58] sm:$0xf] %v629
        %662 = vst [vmem:[%s188 + $0x5c] sm:$0xf] %v630
        %663 = vst [vmem:[%s188 + $0x60] sm:$0xf] %v631
        %664 = vst [vmem:[%s188 + $0x64] sm:$0xf] %v632
        %665 = vst [vmem:[%s188 + $0x68] sm:$0xf] %v633
        %666 = vst [vmem:[%s188 + $0x6c] sm:$0xf] %v634
        %667 = vst [vmem:[%s188 + $0x70] sm:$0xf] %v635
        %668 = vst [vmem:[%s188 + $0x74] sm:$0xf] %v636
        %669 = vst [vmem:[%s188 + $0x78] sm:$0xf] %v637
        %670 = vst [vmem:[%s188 + $0x7c] sm:$0xf] %v638
        %s671 = sand.u32 %s109, 1
        %s672 = scalar_lea.sflag [#allocation3], %s671
        %s673 = sand.u32 %s109, 1
        %s674 = smul.addr %s673, 128
        %s675 = scalar_lea.vmem [#allocation2], %s674
        // Predicated region
        $region33: #{tpu_custom_call.1} parent=31 // pred_check
          %p676 = pneg %p119
        $region34: #{tpu_custom_call.1} parent=31 // pred_check_branch
          %678 = sbr.rel (%p676) target = $region36
        $region35: #{tpu_custom_call.1} parent=31 // pred_region
          %s679 = smul.u32 32, %s22
          %681 = vsyncadd %s672, 0
          %s682 = smul.addr %s21, 32
          %s683 = sadd.s32 %s679, %s682
          %s684 = smul.addr %s683, 4
          %s685 = scalar_lea.hbm %s3, %s684
          %s686 = sshll.u32 %s675, 4
          %s687 = int_to_ptr.vmem [resolvable:$true] %s686
          %s688 = sshll.u32 %s685, 4
          %s689 = int_to_ptr.hbm [resolvable:$true] %s688
          %694 = dma.vmem_to_hbm [thread:$0]  %s687, 2048, %s689, %s672, 64, 64, 4
        $region36: #{tpu_custom_call.1} parent=31 // pred_fallthru
          _
      $region32: #{tpu_custom_call.1} parent=5 // pred_fallthru
        _
      %p695 = scmp.le.s32.totalorder 2, %s12
      // Predicated region
      $region37: #{tpu_custom_call.1} parent=5 // pred_check
        %p696 = pneg %p695
      $region38: #{tpu_custom_call.1} parent=5 // pred_check_branch
        %698 = sbr.rel (%p696) target = $region40
      $region39: #{tpu_custom_call.1} parent=5 // pred_region
        %s699 = ssub.s32 %s12, 2
        // Predicated region
        $region41: #{tpu_custom_call.1} parent=39 // pred_check
          %p700 = pneg %p125
        $region42: #{tpu_custom_call.1} parent=39 // pred_check_branch
          %702 = sbr.rel (%p700) target = $region44
        $region43: #{tpu_custom_call.1} parent=39 // pred_region
          %s703 = sand.u32 %s110, 1
          %s704 = scalar_lea.sflag [#allocation3], %s703
          %s705 = sand.u32 %s110, 1
          %s706 = smul.addr %s705, 128
          %s707 = scalar_lea.vmem [#allocation2], %s706
          %709 = dma.done %s704, 2048
        $region44: #{tpu_custom_call.1} parent=39 // pred_fallthru
          _
      $region40: #{tpu_custom_call.1} parent=5 // pred_fallthru
        _
    $region6: #{tpu_custom_call.1} parent=1 // loop_footer
      %s16 = sadd.s32 1, %s12
    $region7: #{tpu_custom_call.1} parent=1 // loop_footer_branch
      %11 = sbr.rel target = $region3
    $region8: #{tpu_custom_call.1} parent=1 // loop_exit
      _
    %710 = vsyncpa [#allocation3], 1
    %s711 = scalar_lea.sflag [#allocation3], 1
    %712 = vsyncpa %s711, 1

</llo_original>
